<compile_context>
chip_gen: v7x
topology: tpu7x:2x2x1
jax: 0.10.0
libtpu: 0.0.40
codegen_flags: <defaults>
</compile_context>

<pallas_src>
import functools

import jax
import jax.numpy as jnp
from jax.experimental import pallas as pl
from jax.experimental.pallas import tpu as pltpu

_HIDDEN = 128
_LANE = 128


def _round_up(x, m):
    return ((x + m - 1) // m) * m


def _policy_kernel(ls_ref, lg_ref, w1a_ref, w1b_ref, b1_ref, w2_ref, b2_ref,
                   out_ref):
    cd = w1a_ref.dtype
    # Layer 1: cat([ls, lg]) @ W1 realised as two accumulated MXU matmuls
    # (no concat materialisation anywhere), f32 accumulate, bias+ReLU in f32.
    h = jnp.dot(ls_ref[...].astype(cd), w1a_ref[...],
                preferred_element_type=jnp.float32)
    h += jnp.dot(lg_ref[...].astype(cd), w1b_ref[...],
                 preferred_element_type=jnp.float32)
    h = jnp.maximum(h + b1_ref[...], 0.0)
    # Layer 2: (blk_b, H) @ (H, A_pad) MXU matmul, bias + tanh (EUP) in f32,
    # lane-dense (A_pad = 128) store.
    y = jnp.dot(h.astype(cd), w2_ref[...], preferred_element_type=jnp.float32)
    out_ref[...] = jnp.tanh(y + b2_ref[...]).astype(out_ref.dtype)


@functools.partial(jax.jit, static_argnames=("block_b", "compute_dtype"))
def latent_conditioned_policy(latent_state, latent_goal, params, *,
                              block_b=1024, compute_dtype=jnp.bfloat16):
    """Pallas forward pass.

    latent_state / latent_goal: (B, L) float32.
    params: (w1 (2L, H), b1 (1, H), w2 (H, A), b2 (1, A)) float32.
    """
    w1, b1, w2, b2 = params
    B, L = latent_state.shape
    K = 2 * L
    H = w1.shape[1]
    A = w2.shape[1]

    # Lane-dense output: pad the action dim up to a multiple of 128.
    A_pad = _round_up(A, _LANE)

    # Sublane-aligned batch tiles (bf16 packs 16 rows per vreg, f32 packs 8).
    sub = 16 if compute_dtype == jnp.bfloat16 else 8
    blk_b = min(block_b, _round_up(B, sub))
    blk_b = _round_up(blk_b, sub)
    B_pad = _round_up(B, blk_b)

    ls = latent_state
    lg = latent_goal
    if B_pad != B:
        ls = jnp.pad(ls, ((0, B_pad - B), (0, 0)))
        lg = jnp.pad(lg, ((0, B_pad - B), (0, 0)))

    # W1 split into the two halves that multiply latent_state / latent_goal.
    w1a = w1[:L].astype(compute_dtype)
    w1b = w1[L:].astype(compute_dtype)
    w2p = jnp.pad(w2, ((0, 0), (0, A_pad - A))).astype(compute_dtype)
    b1f = b1.astype(jnp.float32)
    b2p = jnp.pad(b2, ((0, 0), (0, A_pad - A))).astype(jnp.float32)

    itemsize = jnp.dtype(compute_dtype).itemsize
    cost = pl.CostEstimate(
        flops=2 * B_pad * K * H + 2 * B_pad * H * A_pad,
        transcendentals=B_pad * A_pad,
        bytes_accessed=B_pad * K * 4                 # activations (f32 in)
        + (K * H + H * A_pad) * itemsize             # weights
        + (H + A_pad) * 4                            # biases
        + B_pad * A_pad * 4,                         # output
    )

    out_pad = pl.pallas_call(
        _policy_kernel,
        out_shape=jax.ShapeDtypeStruct((B_pad, A_pad), jnp.float32),
        grid=(B_pad // blk_b,),
        in_specs=[
            pl.BlockSpec((blk_b, L), lambda i: (i, 0)),    # latent_state tile
            pl.BlockSpec((blk_b, L), lambda i: (i, 0)),    # latent_goal tile
            pl.BlockSpec((L, H), lambda i: (0, 0)),        # W1[:L]  VMEM-resident
            pl.BlockSpec((L, H), lambda i: (0, 0)),        # W1[L:]  VMEM-resident
            pl.BlockSpec((1, H), lambda i: (0, 0)),        # b1      VMEM-resident
            pl.BlockSpec((H, A_pad), lambda i: (0, 0)),    # W2 (lane-padded)
            pl.BlockSpec((1, A_pad), lambda i: (0, 0)),    # b2 (lane-padded)
        ],
        out_specs=pl.BlockSpec((blk_b, A_pad), lambda i: (i, 0)),
        compiler_params=pltpu.CompilerParams(
            dimension_semantics=("parallel",)),
        cost_estimate=cost,
    )(ls, lg, w1a, w1b, b1f, w2p, b2p)

    # Slice away batch padding and the zero-padded action lanes.
    return out_pad[:B, :A]


def init_params(key, latent_dim, action_dim, hidden=_HIDDEN):
    """Deterministic init mimicking nn.Linear default (U[-1/sqrt(fan_in), +])."""
    k1, k2, k3, k4 = jax.random.split(key, 4)
    in1 = 2 * latent_dim
    bound1 = 1.0 / jnp.sqrt(in1)
    bound2 = 1.0 / jnp.sqrt(hidden)
    w1 = jax.random.uniform(k1, (in1, hidden), jnp.float32, -bound1, bound1)
    b1 = jax.random.uniform(k2, (1, hidden), jnp.float32, -bound1, bound1)
    w2 = jax.random.uniform(k3, (hidden, action_dim), jnp.float32, -bound2, bound2)
    b2 = jax.random.uniform(k4, (1, action_dim), jnp.float32, -bound2, bound2)
    return w1, b1, w2, b2


def reference_forward(latent_state, latent_goal, params):
    """Pure-JAX reference matching the PyTorch module semantics."""
    w1, b1, w2, b2 = params
    x = jnp.concatenate([latent_state, latent_goal], axis=-1)
    h = jnp.maximum(x @ w1 + b1, 0.0)
    return jnp.tanh(h @ w2 + b2)


if __name__ == "__main__":
    latent_dim = 32
    action_dim = 8
    batch = 8

    key = jax.random.PRNGKey(0)
    k_params, k_ls, k_lg = jax.random.split(key, 3)

    params = init_params(k_params, latent_dim, action_dim)
    latent_state = jax.random.normal(k_ls, (batch, latent_dim), jnp.float32)
    latent_goal = jax.random.normal(k_lg, (batch, latent_dim), jnp.float32)

    ref = reference_forward(latent_state, latent_goal, params)

    # f32 matmul operands: matches the PyTorch module to tight tolerance.
    out_f32 = latent_conditioned_policy(
        latent_state, latent_goal, params, compute_dtype=jnp.float32)
    out_f32 = jax.block_until_ready(out_f32)
    assert out_f32.shape == (batch, action_dim)
    assert jnp.allclose(out_f32, ref, atol=1e-5, rtol=1e-5)

    # bf16 matmul operands (fast MXU path on v6e/v7x), f32 accumulate/epilogue.
    out_bf16 = latent_conditioned_policy(
        latent_state, latent_goal, params, compute_dtype=jnp.bfloat16)
    out_bf16 = jax.block_until_ready(out_bf16)
    assert out_bf16.shape == (batch, action_dim)
    assert jnp.allclose(out_bf16, ref, atol=5e-2, rtol=5e-2)

    print("KERNEL_OK")
</pallas_src>

<mosaic_0001>
module attributes {stable_mosaic.version = 11 : i64} {
  func.func @_policy_kernel(%arg0: i32, %arg1: memref<8x32xf32, #tpu.memory_space<vmem>>, %arg2: memref<8x32xf32, #tpu.memory_space<vmem>>, %arg3: memref<32x128xf32, #tpu.memory_space<vmem>>, %arg4: memref<32x128xf32, #tpu.memory_space<vmem>>, %arg5: memref<1x128xf32, #tpu.memory_space<vmem>>, %arg6: memref<128x128xf32, #tpu.memory_space<vmem>>, %arg7: memref<1x128xf32, #tpu.memory_space<vmem>>, %arg8: memref<8x128xf32, #tpu.memory_space<vmem>>) attributes {dimension_semantics = [#tpu.dimension_semantics<parallel>], iteration_bounds = array<i64: 1>, scalar_prefetch = 0 : i64, scratch_operands = 0 : i64, tpu.core_type = #tpu.core_type<tc>, window_params = [{transform_indices = @transform_0, window_bounds = array<i64: 8, 32>}, {transform_indices = @transform_1, window_bounds = array<i64: 8, 32>}, {pipeline_mode = #tpu.pipeline_mode<synchronous>, transform_indices = @transform_2, window_bounds = array<i64: 32, 128>}, {pipeline_mode = #tpu.pipeline_mode<synchronous>, transform_indices = @transform_3, window_bounds = array<i64: 32, 128>}, {pipeline_mode = #tpu.pipeline_mode<synchronous>, transform_indices = @transform_4, window_bounds = array<i64: 1, 128>}, {pipeline_mode = #tpu.pipeline_mode<synchronous>, transform_indices = @transform_5, window_bounds = array<i64: 128, 128>}, {pipeline_mode = #tpu.pipeline_mode<synchronous>, transform_indices = @transform_6, window_bounds = array<i64: 1, 128>}, {transform_indices = @transform_7, window_bounds = array<i64: 8, 128>}]} {
    %c0 = arith.constant 0 : index
    %c0_0 = arith.constant 0 : index
    %0 = vector.load %arg1[%c0, %c0_0] : memref<8x32xf32, #tpu.memory_space<vmem>>, vector<8x32xf32>
    %c0_1 = arith.constant 0 : index
    %c0_2 = arith.constant 0 : index
    %1 = vector.load %arg3[%c0_1, %c0_2] : memref<32x128xf32, #tpu.memory_space<vmem>>, vector<32x128xf32>
    %cst = arith.constant dense<0.000000e+00> : vector<8x128xf32>
    %2 = tpu.matmul %0, %1, %cst {dimension_numbers = #tpu.dot_dimension_numbers<[1], [0], [0], [1], [0, 0, 1, 1], [], []>} : vector<8x32xf32>, vector<32x128xf32>, vector<8x128xf32> -> vector<8x128xf32>
    %c0_3 = arith.constant 0 : index
    %c0_4 = arith.constant 0 : index
    %3 = vector.load %arg2[%c0_3, %c0_4] : memref<8x32xf32, #tpu.memory_space<vmem>>, vector<8x32xf32>
    %c0_5 = arith.constant 0 : index
    %c0_6 = arith.constant 0 : index
    %4 = vector.load %arg4[%c0_5, %c0_6] : memref<32x128xf32, #tpu.memory_space<vmem>>, vector<32x128xf32>
    %cst_7 = arith.constant dense<0.000000e+00> : vector<8x128xf32>
    %5 = tpu.matmul %3, %4, %cst_7 {dimension_numbers = #tpu.dot_dimension_numbers<[1], [0], [0], [1], [0, 0, 1, 1], [], []>} : vector<8x32xf32>, vector<32x128xf32>, vector<8x128xf32> -> vector<8x128xf32>
    %6 = arith.addf %2, %5 : vector<8x128xf32>
    %c0_8 = arith.constant 0 : index
    %c0_9 = arith.constant 0 : index
    %7 = vector.load %arg5[%c0_8, %c0_9] : memref<1x128xf32, #tpu.memory_space<vmem>>, vector<1x128xf32>
    %8 = vector.broadcast %7 : vector<1x128xf32> to vector<8x128xf32>
    %9 = arith.addf %6, %8 : vector<8x128xf32>
    %cst_10 = arith.constant 0.000000e+00 : f32
    %10 = vector.broadcast %cst_10 : f32 to vector<8x128xf32>
    %11 = arith.maximumf %9, %10 : vector<8x128xf32>
    %c0_11 = arith.constant 0 : index
    %c0_12 = arith.constant 0 : index
    %12 = vector.load %arg6[%c0_11, %c0_12] : memref<128x128xf32, #tpu.memory_space<vmem>>, vector<128x128xf32>
    %cst_13 = arith.constant dense<0.000000e+00> : vector<8x128xf32>
    %13 = tpu.matmul %11, %12, %cst_13 {dimension_numbers = #tpu.dot_dimension_numbers<[1], [0], [0], [1], [0, 0, 1, 1], [], []>} : vector<8x128xf32>, vector<128x128xf32>, vector<8x128xf32> -> vector<8x128xf32>
    %c0_14 = arith.constant 0 : index
    %c0_15 = arith.constant 0 : index
    %14 = vector.load %arg7[%c0_14, %c0_15] : memref<1x128xf32, #tpu.memory_space<vmem>>, vector<1x128xf32>
    %15 = vector.broadcast %14 : vector<1x128xf32> to vector<8x128xf32>
    %16 = arith.addf %13, %15 : vector<8x128xf32>
    %17 = math.tanh %16 : vector<8x128xf32>
    %c0_16 = arith.constant 0 : index
    %c0_17 = arith.constant 0 : index
    %18 = vector.load %arg8[%c0_16, %c0_17] : memref<8x128xf32, #tpu.memory_space<vmem>>, vector<8x128xf32>
    tpu.vector_store %arg8[%c0_16, %c0_17], %17 {strides = array<i32>} : memref<8x128xf32, #tpu.memory_space<vmem>>, vector<8x128xf32>,
    return
  }
  func.func @transform_0(%arg0: i32) -> (i32, i32) {
    %c0_i32 = arith.constant 0 : i32
    %c0_i32_0 = arith.constant 0 : i32
    return %arg0, %c0_i32 : i32, i32
  }
  func.func @transform_1(%arg0: i32) -> (i32, i32) {
    %c0_i32 = arith.constant 0 : i32
    %c0_i32_0 = arith.constant 0 : i32
    return %arg0, %c0_i32 : i32, i32
  }
  func.func @transform_2(%arg0: i32) -> (i32, i32) {
    %c0_i32 = arith.constant 0 : i32
    %c0_i32_0 = arith.constant 0 : i32
    %c0_i32_1 = arith.constant 0 : i32
    return %c0_i32, %c0_i32_0 : i32, i32
  }
  func.func @transform_3(%arg0: i32) -> (i32, i32) {
    %c0_i32 = arith.constant 0 : i32
    %c0_i32_0 = arith.constant 0 : i32
    %c0_i32_1 = arith.constant 0 : i32
    return %c0_i32, %c0_i32_0 : i32, i32
  }
  func.func @transform_4(%arg0: i32) -> (i32, i32) {
    %c0_i32 = arith.constant 0 : i32
    %c0_i32_0 = arith.constant 0 : i32
    %c0_i32_1 = arith.constant 0 : i32
    return %c0_i32, %c0_i32_0 : i32, i32
  }
  func.func @transform_5(%arg0: i32) -> (i32, i32) {
    %c0_i32 = arith.constant 0 : i32
    %c0_i32_0 = arith.constant 0 : i32
    %c0_i32_1 = arith.constant 0 : i32
    return %c0_i32, %c0_i32_0 : i32, i32
  }
  func.func @transform_6(%arg0: i32) -> (i32, i32) {
    %c0_i32 = arith.constant 0 : i32
    %c0_i32_0 = arith.constant 0 : i32
    %c0_i32_1 = arith.constant 0 : i32
    return %c0_i32, %c0_i32_0 : i32, i32
  }
  func.func @transform_7(%arg0: i32) -> (i32, i32) {
    %c0_i32 = arith.constant 0 : i32
    %c0_i32_0 = arith.constant 0 : i32
    return %arg0, %c0_i32 : i32, i32
  }
}

</mosaic_0001>

<llo_original>
// kernel: latent_conditioned_policy.1
$region0: #{latent_conditioned_policy.1}
  #allocation0 [shape = 'u32[]', space=smem, size = 0x4, offset = 0x4, fixed_abs, tag = 'smem constant byte address 0x4 - core index']
  #allocation1 [shape = 'u32[144,128]{1,0:T(1,128)}', space=vmem, size = 0x12000, scoped, tag = 'internal scratch']
  %s0 = inlined_call_operand.vmem [shape: f32[8,32], index: 0, kind: input, shape index: {}]
  %s1 = inlined_call_operand.vmem [shape: f32[8,32], index: 1, kind: input, shape index: {}]
  %s2 = inlined_call_operand.vmem [shape: f32[32,128], index: 2, kind: input, shape index: {}]
  %s3 = inlined_call_operand.vmem [shape: f32[32,128], index: 3, kind: input, shape index: {}]
  %s4 = inlined_call_operand.vmem [shape: f32[1,128], index: 4, kind: input, shape index: {}]
  %s5 = inlined_call_operand.vmem [shape: f32[128,128], index: 5, kind: input, shape index: {}]
  %s6 = inlined_call_operand.vmem [shape: f32[1,128], index: 6, kind: input, shape index: {}]
  %s7 = inlined_call_operand.hbm [shape: f32[8,128], index: 7, kind: output, shape index: {}]
  %s8 = sld [smem:[#allocation0]]
  $region38: #{latent_conditioned_policy.1} parent=0
    _
  %s10 = ssub.s32 1, %s8
  %s11 = scalar_select 0, %s10, %s8
  $region1: #{latent_conditioned_policy.1} parent=0
    #allocation2 [shape = 'u8[4096]{0}', space=vmem, size = 0x1000, scoped, tag = 'output window, operand 0, single buffered']
    #allocation3 [shape = 's32[1]{0}', space=sflag, size = 0x4, scoped, tag = 'scoped memory for latent_conditioned_policy.1']
    %12 = vsyncpa [#allocation3], 0
    // Predicated region
    $region2: #{latent_conditioned_policy.1} parent=1 // pred_check
      _
    $region3: #{latent_conditioned_policy.1} parent=1 // pred_check_branch
      %14 = sbr.rel (0) target = $region5
    $region4: #{latent_conditioned_policy.1} parent=1 // pred_region
      _
    $region5: #{latent_conditioned_policy.1} parent=1 // pred_fallthru
      _
    // Predicated region
    $region6: #{latent_conditioned_policy.1} parent=1 // pred_check
      _
    $region7: #{latent_conditioned_policy.1} parent=1 // pred_check_branch
      %16 = sbr.rel (0) target = $region9
    $region8: #{latent_conditioned_policy.1} parent=1 // pred_region
      _
    $region9: #{latent_conditioned_policy.1} parent=1 // pred_fallthru
      _
    // Predicated region
    $region10: #{latent_conditioned_policy.1} parent=1 // pred_check
      _
    $region11: #{latent_conditioned_policy.1} parent=1 // pred_check_branch
      %18 = sbr.rel (0) target = $region13
    $region12: #{latent_conditioned_policy.1} parent=1 // pred_region
      _
    $region13: #{latent_conditioned_policy.1} parent=1 // pred_fallthru
      _
    // Predicated region
    $region14: #{latent_conditioned_policy.1} parent=1 // pred_check
      _
    $region15: #{latent_conditioned_policy.1} parent=1 // pred_check_branch
      %20 = sbr.rel (0) target = $region17
    $region16: #{latent_conditioned_policy.1} parent=1 // pred_region
      _
    $region17: #{latent_conditioned_policy.1} parent=1 // pred_fallthru
      _
    // Predicated region
    $region18: #{latent_conditioned_policy.1} parent=1 // pred_check
      _
    $region19: #{latent_conditioned_policy.1} parent=1 // pred_check_branch
      %22 = sbr.rel (0) target = $region21
    $region20: #{latent_conditioned_policy.1} parent=1 // pred_region
      _
    $region21: #{latent_conditioned_policy.1} parent=1 // pred_fallthru
      _
    // Predicated region
    $region22: #{latent_conditioned_policy.1} parent=1 // pred_check
      _
    $region23: #{latent_conditioned_policy.1} parent=1 // pred_check_branch
      %24 = sbr.rel (0) target = $region25
    $region24: #{latent_conditioned_policy.1} parent=1 // pred_region
      _
    $region25: #{latent_conditioned_policy.1} parent=1 // pred_fallthru
      _
    // Predicated region
    $region26: #{latent_conditioned_policy.1} parent=1 // pred_check
      _
    $region27: #{latent_conditioned_policy.1} parent=1 // pred_check_branch
      %26 = sbr.rel (0) target = $region29
    $region28: #{latent_conditioned_policy.1} parent=1 // pred_region
      _
    $region29: #{latent_conditioned_policy.1} parent=1 // pred_fallthru
      _
    %v27 = vld [vmem:[%s0] sm:$0xff]
    %v28 = vld [vmem:[%s2] sm:$0xff]
    %v29 = vld [vmem:[%s2 + $0x8] sm:$0xff]
    %v30 = vld [vmem:[%s2 + $0x10] sm:$0xff]
    %v31 = vld [vmem:[%s2 + $0x18] sm:$0xff]
    %v32 = vld [vmem:[%s1] sm:$0xff]
    %v33 = vld [vmem:[%s3] sm:$0xff]
    %v34 = vld [vmem:[%s3 + $0x8] sm:$0xff]
    %v35 = vld [vmem:[%s3 + $0x10] sm:$0xff]
    %v36 = vld [vmem:[%s3 + $0x18] sm:$0xff]
    %vm37 = vcmask 261120
    %v39 = vsel %vm37, %v32, 0
    %41 = vmatprep.subr.mxu0 0.0
    %42 = vmatpush1.msra.mxu0 %v33
    %43 = vmatprep.subr.mxu0 0.0
    %44 = vmatpush1.msra.mxu0 %v34
    %45 = vmatprep.subr.mxu0 0.0
    %46 = vmatpush1.msra.mxu0 %v35
    %47 = vmatprep.subr.mxu0 0.0
    %48 = vmatpush1.msra.mxu0 %v36
    %49 = vmatprep.subr.mxu0 0.0
    %50 = vmatpush1.msra.mxu0 0.0
    %51 = vmatprep.subr.mxu0 0.0
    %52 = vmatpush1.msra.mxu0 0.0
    %53 = vmatprep.subr.mxu0 0.0
    %54 = vmatpush1.msra.mxu0 0.0
    %55 = vmatprep.subr.mxu0 0.0
    %56 = vmatpush1.msra.mxu0 0.0
    %57 = vmatprep.subr.mxu0 0.0
    %58 = vmatpush1.msra.mxu0 0.0
    %59 = vmatprep.subr.mxu0 0.0
    %60 = vmatpush1.msra.mxu0 0.0
    %61 = vmatprep.subr.mxu0 0.0
    %62 = vmatpush1.msra.mxu0 0.0
    %63 = vmatprep.subr.mxu0 0.0
    %64 = vmatpush1.msra.mxu0 0.0
    %65 = vmatprep.subr.mxu0 0.0
    %66 = vmatpush1.msra.mxu0 0.0
    %67 = vmatprep.subr.mxu0 0.0
    %68 = vmatpush1.msra.mxu0 0.0
    %69 = vmatprep.subr.mxu0 0.0
    %70 = vmatpush1.msra.mxu0 0.0
    %71 = vmatprep.subr.mxu0 0.0
    %72 = vmatpush1.msra.mxu0 0.0
    %73 = vmatprep.subr.mxu0 0.0
    %74 = vmatpush1.msra.mxu0 0.0
    %75 = vmatprep.subr.mxu0 0.0
    %76 = vmatpush1.msra.mxu0 0.0
    %77 = vmatprep.subr.mxu0 0.0
    %78 = vmatpush1.msra.mxu0 0.0
    %79 = vmatprep.subr.mxu0 0.0
    %80 = vmatpush1.msra.mxu0 0.0
    %81 = vmatprep.subr.mxu0 0.0
    %82 = vmatpush1.msra.mxu0 0.0
    %83 = vmatprep.subr.mxu0 0.0
    %84 = vmatpush1.msra.mxu0 0.0
    %85 = vmatprep.subr.mxu0 0.0
    %86 = vmatpush1.msra.mxu0 0.0
    %87 = vmatprep.subr.mxu0 0.0
    %88 = vmatpush1.msra.mxu0 0.0
    %89 = vmatprep.subr.mxu0 0.0
    %90 = vmatpush1.msra.mxu0 0.0
    %91 = vmatprep.subr.mxu0 0.0
    %92 = vmatpush1.msra.mxu0 0.0
    %93 = vmatprep.subr.mxu0 0.0
    %94 = vmatpush1.msra.mxu0 0.0
    %95 = vmatprep.subr.mxu0 0.0
    %96 = vmatpush1.msra.mxu0 0.0
    %97 = vmatprep.subr.mxu0 0.0
    %98 = vmatpush1.msra.mxu0 0.0
    %99 = vmatprep.subr.mxu0 0.0
    %100 = vmatpush1.msra.mxu0 0.0
    %101 = vmatprep.subr.mxu0 0.0
    %102 = vmatpush1.msra.mxu0 0.0
    %103 = vmatprep.subr.mxu0 0.0
    %104 = vmatpush1.msra.mxu0 0.0
    %105 = vmatprep.mubr.f32.mxu0 0.0
    %106 = vmatmul.mubr.f32.gmra.mrb[0].mxu0 %v39
    %v107 = vpop.f32.mrb[0].mxu0
    %v108 = vadd.f32 0.0, %v107
    %v109 = vpop.f32.mrb[0].mxu0
    %110 = vdwg.mxu0
    %v112 = vsel %vm37, %v27, 0
    %114 = vmatprep.subr.mxu0 0.0
    %115 = vmatpush1.msra.mxu0 %v28
    %116 = vmatprep.subr.mxu0 0.0
    %117 = vmatpush1.msra.mxu0 %v29
    %118 = vmatprep.subr.mxu0 0.0
    %119 = vmatpush1.msra.mxu0 %v30
    %120 = vmatprep.subr.mxu0 0.0
    %121 = vmatpush1.msra.mxu0 %v31
    %122 = vmatprep.subr.mxu0 0.0
    %123 = vmatpush1.msra.mxu0 0.0
    %124 = vmatprep.subr.mxu0 0.0
    %125 = vmatpush1.msra.mxu0 0.0
    %126 = vmatprep.subr.mxu0 0.0
    %127 = vmatpush1.msra.mxu0 0.0
    %128 = vmatprep.subr.mxu0 0.0
    %129 = vmatpush1.msra.mxu0 0.0
    %130 = vmatprep.subr.mxu0 0.0
    %131 = vmatpush1.msra.mxu0 0.0
    %132 = vmatprep.subr.mxu0 0.0
    %133 = vmatpush1.msra.mxu0 0.0
    %134 = vmatprep.subr.mxu0 0.0
    %135 = vmatpush1.msra.mxu0 0.0
    %136 = vmatprep.subr.mxu0 0.0
    %137 = vmatpush1.msra.mxu0 0.0
    %138 = vmatprep.subr.mxu0 0.0
    %139 = vmatpush1.msra.mxu0 0.0
    %140 = vmatprep.subr.mxu0 0.0
    %141 = vmatpush1.msra.mxu0 0.0
    %142 = vmatprep.subr.mxu0 0.0
    %143 = vmatpush1.msra.mxu0 0.0
    %144 = vmatprep.subr.mxu0 0.0
    %145 = vmatpush1.msra.mxu0 0.0
    %146 = vmatprep.subr.mxu0 0.0
    %147 = vmatpush1.msra.mxu0 0.0
    %148 = vmatprep.subr.mxu0 0.0
    %149 = vmatpush1.msra.mxu0 0.0
    %150 = vmatprep.subr.mxu0 0.0
    %151 = vmatpush1.msra.mxu0 0.0
    %152 = vmatprep.subr.mxu0 0.0
    %153 = vmatpush1.msra.mxu0 0.0
    %154 = vmatprep.subr.mxu0 0.0
    %155 = vmatpush1.msra.mxu0 0.0
    %156 = vmatprep.subr.mxu0 0.0
    %157 = vmatpush1.msra.mxu0 0.0
    %158 = vmatprep.subr.mxu0 0.0
    %159 = vmatpush1.msra.mxu0 0.0
    %160 = vmatprep.subr.mxu0 0.0
    %161 = vmatpush1.msra.mxu0 0.0
    %162 = vmatprep.subr.mxu0 0.0
    %163 = vmatpush1.msra.mxu0 0.0
    %164 = vmatprep.subr.mxu0 0.0
    %165 = vmatpush1.msra.mxu0 0.0
    %166 = vmatprep.subr.mxu0 0.0
    %167 = vmatpush1.msra.mxu0 0.0
    %168 = vmatprep.subr.mxu0 0.0
    %169 = vmatpush1.msra.mxu0 0.0
    %170 = vmatprep.subr.mxu0 0.0
    %171 = vmatpush1.msra.mxu0 0.0
    %172 = vmatprep.subr.mxu0 0.0
    %173 = vmatpush1.msra.mxu0 0.0
    %174 = vmatprep.subr.mxu0 0.0
    %175 = vmatpush1.msra.mxu0 0.0
    %176 = vmatprep.subr.mxu0 0.0
    %177 = vmatpush1.msra.mxu0 0.0
    %178 = vmatprep.mubr.f32.mxu0 0.0
    %179 = vmatmul.mubr.f32.gmra.mrb[0].mxu0 %v112
    %v180 = vpop.f32.mrb[0].mxu0
    %v181 = vadd.f32 %v108, %v180
    %v182 = vpop.f32.mrb[0].mxu0
    %183 = vdwg.mxu0
    %v184 = vld [vmem:[%s4] sm:$0x1]
    %v186 = vlaneseq
    %v187 = vshrl.u32 %v186, 7
    %v188 = vsub.s32 0, %v187
    %v189 = vrot.slane %v184, %v188
    %v191 = vadd.f32 %v181, %v189
    %v192 = vmax.f32 %v191, 0.0
    %v193 = vld [vmem:[%s5] sm:$0xff]
    %v194 = vld [vmem:[%s5 + $0x8] sm:$0xff]
    %v195 = vld [vmem:[%s5 + $0x10] sm:$0xff]
    %v196 = vld [vmem:[%s5 + $0x18] sm:$0xff]
    %v197 = vld [vmem:[%s5 + $0x20] sm:$0xff]
    %v198 = vld [vmem:[%s5 + $0x28] sm:$0xff]
    %v199 = vld [vmem:[%s5 + $0x30] sm:$0xff]
    %v200 = vld [vmem:[%s5 + $0x38] sm:$0xff]
    %v201 = vld [vmem:[%s5 + $0x40] sm:$0xff]
    %v202 = vld [vmem:[%s5 + $0x48] sm:$0xff]
    %v203 = vld [vmem:[%s5 + $0x50] sm:$0xff]
    %v204 = vld [vmem:[%s5 + $0x58] sm:$0xff]
    %v205 = vld [vmem:[%s5 + $0x60] sm:$0xff]
    %v206 = vld [vmem:[%s5 + $0x68] sm:$0xff]
    %v207 = vld [vmem:[%s5 + $0x70] sm:$0xff]
    %v208 = vld [vmem:[%s5 + $0x78] sm:$0xff]
    %v209 = vld [vmem:[%s6] sm:$0x1]
    %v211 = vlaneseq
    %v212 = vshrl.u32 %v211, 7
    %v213 = vsub.s32 0, %v212
    %v214 = vrot.slane %v209, %v213
    %216 = vmatprep.subr.mxu0 0.0
    %217 = vmatpush1.msra.mxu0 %v193
    %218 = vmatprep.subr.mxu0 0.0
    %219 = vmatpush1.msra.mxu0 %v194
    %220 = vmatprep.subr.mxu0 0.0
    %221 = vmatpush1.msra.mxu0 %v195
    %222 = vmatprep.subr.mxu0 0.0
    %223 = vmatpush1.msra.mxu0 %v196
    %224 = vmatprep.subr.mxu0 0.0
    %225 = vmatpush1.msra.mxu0 %v197
    %226 = vmatprep.subr.mxu0 0.0
    %227 = vmatpush1.msra.mxu0 %v198
    %228 = vmatprep.subr.mxu0 0.0
    %229 = vmatpush1.msra.mxu0 %v199
    %230 = vmatprep.subr.mxu0 0.0
    %231 = vmatpush1.msra.mxu0 %v200
    %232 = vmatprep.subr.mxu0 0.0
    %233 = vmatpush1.msra.mxu0 %v201
    %234 = vmatprep.subr.mxu0 0.0
    %235 = vmatpush1.msra.mxu0 %v202
    %236 = vmatprep.subr.mxu0 0.0
    %237 = vmatpush1.msra.mxu0 %v203
    %238 = vmatprep.subr.mxu0 0.0
    %239 = vmatpush1.msra.mxu0 %v204
    %240 = vmatprep.subr.mxu0 0.0
    %241 = vmatpush1.msra.mxu0 %v205
    %242 = vmatprep.subr.mxu0 0.0
    %243 = vmatpush1.msra.mxu0 %v206
    %244 = vmatprep.subr.mxu0 0.0
    %245 = vmatpush1.msra.mxu0 %v207
    %246 = vmatprep.subr.mxu0 0.0
    %247 = vmatpush1.msra.mxu0 %v208
    %248 = vmatprep.subr.mxu0 0.0
    %249 = vmatpush1.msra.mxu0 0.0
    %250 = vmatprep.subr.mxu0 0.0
    %251 = vmatpush1.msra.mxu0 0.0
    %252 = vmatprep.subr.mxu0 0.0
    %253 = vmatpush1.msra.mxu0 0.0
    %254 = vmatprep.subr.mxu0 0.0
    %255 = vmatpush1.msra.mxu0 0.0
    %256 = vmatprep.subr.mxu0 0.0
    %257 = vmatpush1.msra.mxu0 0.0
    %258 = vmatprep.subr.mxu0 0.0
    %259 = vmatpush1.msra.mxu0 0.0
    %260 = vmatprep.subr.mxu0 0.0
    %261 = vmatpush1.msra.mxu0 0.0
    %262 = vmatprep.subr.mxu0 0.0
    %263 = vmatpush1.msra.mxu0 0.0
    %264 = vmatprep.subr.mxu0 0.0
    %265 = vmatpush1.msra.mxu0 0.0
    %266 = vmatprep.subr.mxu0 0.0
    %267 = vmatpush1.msra.mxu0 0.0
    %268 = vmatprep.subr.mxu0 0.0
    %269 = vmatpush1.msra.mxu0 0.0
    %270 = vmatprep.subr.mxu0 0.0
    %271 = vmatpush1.msra.mxu0 0.0
    %272 = vmatprep.subr.mxu0 0.0
    %273 = vmatpush1.msra.mxu0 0.0
    %274 = vmatprep.subr.mxu0 0.0
    %275 = vmatpush1.msra.mxu0 0.0
    %276 = vmatprep.subr.mxu0 0.0
    %277 = vmatpush1.msra.mxu0 0.0
    %278 = vmatprep.subr.mxu0 0.0
    %279 = vmatpush1.msra.mxu0 0.0
    %280 = vmatprep.mubr.f32.mxu0 0.0
    %281 = vmatmul.mubr.f32.gmra.mrb[0].mxu0 %v192
    %v282 = vpop.f32.mrb[0].mxu0
    %v283 = vadd.f32 %v214, %v282
    %v284 = vpop.f32.mrb[0].mxu0
    %285 = vdwg.mxu0
    %v286 = vtanh.pop %v283
    %287 = vst [vmem:[#allocation2] sm:$0xff] %v286
    // Predicated region
    $region30: #{latent_conditioned_policy.1} parent=1 // pred_check
      _
    $region31: #{latent_conditioned_policy.1} parent=1 // pred_check_branch
      %289 = sbr.rel (0) target = $region33
    $region32: #{latent_conditioned_policy.1} parent=1 // pred_region
      %s291 = ssub.s32 128, 128
      %292 = vsyncadd [#allocation3], %s291
      %s294 = sshll.u32 [#allocation2], 4
      %s295 = int_to_ptr.vmem [resolvable:$true] %s294
      %297 = dma.vmem_to_hbm [thread:$0]  %s295, 128, %s7, [#allocation3]
    $region33: #{latent_conditioned_policy.1} parent=1 // pred_fallthru
      _
    // Predicated region
    $region34: #{latent_conditioned_policy.1} parent=1 // pred_check
      _
    $region35: #{latent_conditioned_policy.1} parent=1 // pred_check_branch
      %299 = sbr.rel (0) target = $region37
    $region36: #{latent_conditioned_policy.1} parent=1 // pred_region
      %300 = dma.done [#allocation3], 128
    $region37: #{latent_conditioned_policy.1} parent=1 // pred_fallthru
      _
    %301 = vsyncpa [#allocation3], 1

</llo_original>
